<compile_context>
chip_gen: v5e
topology: v5e:2x2
jax: 0.10.0
libtpu: 0.0.40
codegen_flags: <defaults>
</compile_context>

<pallas_src>
import jax
import jax.numpy as jnp
from jax.experimental import pallas as pl
from jax.experimental.pallas import tpu as pltpu


def _conv1x1_kernel(x_ref, w_ref, o_ref):
    # x_ref: (C_in, THW) spatial tile, w_ref: (TN, C_in) weight tile,
    # o_ref: (TN, THW) output tile.  Single-shot MXU matmul, f32 accumulation.
    o_ref[...] = jnp.dot(
        w_ref[...], x_ref[...], preferred_element_type=jnp.float32
    ).astype(o_ref.dtype)


def _pick_tiles(HW, C_in, C_out, itemsize):
    """Choose (spatial tile, C_out tile) so double-buffered tiles stay well under
    the smallest scoped-VMEM default (16 MiB on v5e; 32 MiB on v6e/v7x)."""
    tn = C_out if C_out <= 512 else 512           # full C_out resident unless very wide
    budget = 8 * 1024 * 1024                      # comfortable on every generation
    w_bytes = 2 * tn * C_in * itemsize            # double-buffered weight tile
    per_col = 2 * (C_in + tn) * itemsize          # double-buffered x + out, per lane col
    avail = max(budget - w_bytes, per_col * 128)
    thw = max(128, (avail // per_col) // 128 * 128)
    thw = min(thw, 2048)                          # >=512 amortizes per-grid-step overhead
    if HW <= 128:
        thw = HW                                  # full-dim block (exempt from 128 rule)
    else:
        thw = min(thw, pl.cdiv(HW, 128) * 128)
    return int(thw), int(tn)


@jax.jit
def adaptive_projector_block(x_nchw, weight_oi11):
    """Equivalent of nn.Conv2d(in, out, kernel_size=1, bias=False) on NCHW input.

    x_nchw:      (N, C_in, H, W)
    weight_oi11: (C_out, C_in, 1, 1)   -- PyTorch conv weight layout
    returns:     (N, C_out, H, W)
    """
    N, C_in, H, W = x_nchw.shape
    C_out = weight_oi11.shape[0]
    HW = H * W
    itemsize = jnp.dtype(x_nchw.dtype).itemsize

    # Free, contiguous reshape: NCHW -> (N, C_in, HW). No transposes, no padding.
    x = x_nchw.reshape(N, C_in, HW)
    # (C_out, C_in, 1, 1) -> (C_out, C_in); cast to activation dtype so MXU mode is explicit.
    w = weight_oi11[:, :, 0, 0].astype(x_nchw.dtype)

    thw, tn = _pick_tiles(HW, C_in, C_out, itemsize)
    grid = (N, pl.cdiv(C_out, tn), pl.cdiv(HW, thw))

    # TODO(synk): for very large C_in (weight row doesn't fit VMEM / compute-bound case),
    # add a K-axis grid dimension with a VMEM f32 accumulator; not needed at these sizes.

    cost = pl.CostEstimate(
        flops=2 * N * HW * C_in * C_out,
        transcendentals=0,
        bytes_accessed=itemsize * (N * HW * C_in + N * HW * C_out + C_in * C_out),
    )

    out = pl.pallas_call(
        _conv1x1_kernel,
        out_shape=jax.ShapeDtypeStruct((N, C_out, HW), x_nchw.dtype),
        grid_spec=pltpu.PrefetchScalarGridSpec(
            num_scalar_prefetch=0,
            grid=grid,
            in_specs=[
                # activation: batch dim squeezed, channels x spatial tile
                pl.BlockSpec((None, C_in, thw), lambda n, co, j: (n, 0, j)),
                # weight: (C_out tile, C_in); resident across n / spatial steps
                pl.BlockSpec((tn, C_in), lambda n, co, j: (co, 0)),
            ],
            out_specs=pl.BlockSpec((None, tn, thw), lambda n, co, j: (n, co, j)),
        ),
        compiler_params=pltpu.CompilerParams(
            dimension_semantics=("parallel", "parallel", "parallel"),
        ),
        cost_estimate=cost,
    )(x, w)

    # Free reshape back to NCHW.
    return out.reshape(N, C_out, H, W)


if __name__ == "__main__":
    key = jax.random.PRNGKey(0)
    k_x, k_w = jax.random.split(key)

    N, C_in, H, W = 2, 4, 16, 16
    C_out = 8

    x = jax.random.normal(k_x, (N, C_in, H, W), dtype=jnp.float32)
    # Deterministic conv weight, PyTorch layout (C_out, C_in, 1, 1).
    weight = jax.random.normal(k_w, (C_out, C_in, 1, 1), dtype=jnp.float32) * 0.1

    out = adaptive_projector_block(x, weight)
    out = jax.block_until_ready(out)

    # Reference check in plain JAX (1x1 conv == einsum over channels).
    ref = jnp.einsum("nchw,oc->nohw", x, weight[:, :, 0, 0])
    assert out.shape == (N, C_out, H, W)
    assert jnp.allclose(out, ref, atol=1e-5, rtol=1e-5)

    print("KERNEL_OK")
</pallas_src>

<mosaic_0001>
module attributes {stable_mosaic.version = 11 : i64} {
  func.func @_conv1x1_kernel(%arg0: i32, %arg1: i32, %arg2: i32, %arg3: memref<1x4x256xf32, #tpu.memory_space<vmem>>, %arg4: memref<8x4xf32, #tpu.memory_space<vmem>>, %arg5: memref<1x8x256xf32, #tpu.memory_space<vmem>>) attributes {dimension_semantics = [#tpu.dimension_semantics<parallel>, #tpu.dimension_semantics<parallel>, #tpu.dimension_semantics<parallel>], iteration_bounds = array<i64: 2, 1, 1>, scalar_prefetch = 0 : i64, scratch_operands = 0 : i64, tpu.core_type = #tpu.core_type<tc>, window_params = [{transform_indices = @transform_0, window_bounds = array<i64: 1, 4, 256>}, {transform_indices = @transform_1, window_bounds = array<i64: 8, 4>}, {transform_indices = @transform_2, window_bounds = array<i64: 1, 8, 256>}]} {
    %c0 = arith.constant 0 : index
    %c0_0 = arith.constant 0 : index
    %0 = vector.load %arg4[%c0, %c0_0] : memref<8x4xf32, #tpu.memory_space<vmem>>, vector<8x4xf32>
    %c0_1 = arith.constant 0 : index
    %c0_2 = arith.constant 0 : index
    %c0_3 = arith.constant 0 : index
    %1 = vector.load %arg3[%c0_1, %c0_2, %c0_3] : memref<1x4x256xf32, #tpu.memory_space<vmem>>, vector<1x4x256xf32>
    %2 = vector.shape_cast %1 : vector<1x4x256xf32> to vector<4x256xf32>
    %cst = arith.constant dense<0.000000e+00> : vector<8x256xf32>
    %3 = tpu.matmul %0, %2, %cst {dimension_numbers = #tpu.dot_dimension_numbers<[1], [0], [0], [1], [0, 0, 1, 1], [], []>} : vector<8x4xf32>, vector<4x256xf32>, vector<8x256xf32> -> vector<8x256xf32>
    %c0_4 = arith.constant 0 : index
    %c0_5 = arith.constant 0 : index
    %c0_6 = arith.constant 0 : index
    %4 = vector.load %arg5[%c0_4, %c0_5, %c0_6] : memref<1x8x256xf32, #tpu.memory_space<vmem>>, vector<1x8x256xf32>
    %5 = vector.shape_cast %4 : vector<1x8x256xf32> to vector<8x256xf32>
    %6 = vector.shape_cast %3 : vector<8x256xf32> to vector<1x8x256xf32>
    tpu.vector_store %arg5[%c0_4, %c0_5, %c0_6], %6 {strides = array<i32>} : memref<1x8x256xf32, #tpu.memory_space<vmem>>, vector<1x8x256xf32>,
    return
  }
  func.func @transform_0(%arg0: i32, %arg1: i32, %arg2: i32) -> (i32, i32, i32) {
    %c0_i32 = arith.constant 0 : i32
    %c0_i32_0 = arith.constant 0 : i32
    return %arg0, %c0_i32, %arg2 : i32, i32, i32
  }
  func.func @transform_1(%arg0: i32, %arg1: i32, %arg2: i32) -> (i32, i32) {
    %c0_i32 = arith.constant 0 : i32
    %c0_i32_0 = arith.constant 0 : i32
    return %arg1, %c0_i32 : i32, i32
  }
  func.func @transform_2(%arg0: i32, %arg1: i32, %arg2: i32) -> (i32, i32, i32) {
    %c0_i32 = arith.constant 0 : i32
    return %arg0, %arg1, %arg2 : i32, i32, i32
  }
}

</mosaic_0001>

<llo_original>
// kernel: adaptive_projector_block.1
$region0: #{adaptive_projector_block.1}
  #allocation0 [shape = 'u32[]', space=smem, size = 0x4, offset = 0x4, fixed_abs, tag = 'smem constant byte address 0x4 - core index']
  #allocation1 [shape = 'u32[72,128]{1,0:T(1,128)}', space=vmem, size = 0x9000, scoped, tag = 'internal scratch']
  %s0 = inlined_call_operand.vmem [shape: f32[2,4,256], index: 0, kind: input, shape index: {}]
  %s1 = inlined_call_operand.vmem [shape: f32[8,4], index: 1, kind: input, shape index: {}]
  %s2 = inlined_call_operand.vmem [shape: f32[2,8,256], index: 2, kind: output, shape index: {}]
  %s3 = sld [smem:[#allocation0]]
  $region41: #{adaptive_projector_block.1} parent=0
    _
  %s5 = ssub.s32 1, %s3
  %s6 = scalar_select 0, %s5, %s3
  loop: start=0, step=1, limit=4
  $region2: #{adaptive_projector_block.1} parent=0 // loop_pre_header
    _
  $region3: #{adaptive_projector_block.1} parent=0 // loop_header
    %s8 = sphi 0, %s12
    %p9 = scmp.ge.s32.totalorder %s8, 4
    %s15 = sphi 0, %s34
    %s16 = sphi 0, %s30
    %s17 = sphi 0, %s26
    %s18 = sphi 0, %s15
    %s19 = sphi 0, %s16
    %s20 = sphi 0, %s17
    %s21 = sphi 0, %s18
    %s22 = sphi 0, %s19
    %s23 = sphi 0, %s20
    %s39 = sphi 0, %s41
    %s42 = sphi 0, %s39
    %s43 = sphi 0, %s42
    %s59 = sphi 0, %s43
    %s65 = sphi 0, %s67
    %s68 = sphi 0, %s65
    %s69 = sphi 0, %s68
    %s85 = sphi 0, %s69
    %s95 = sphi 0, %s97
    %s98 = sphi 0, %s95
    %s99 = sphi 0, %s98
    %s115 = sphi 0, %s99
  $region4: #{adaptive_projector_block.1} parent=0 // loop_header_branch
    %11 = sbr.rel (%p9) target = $region8
  $region5: #{adaptive_projector_block.1} parent=0 // loop_body
    %s13 = ssub.s32 %s8, 1
    %s14 = ssub.s32 %s8, 2
    %s24 = sadd.s32 1, %s17
    %p25 = scmp.ge.s32.totalorder %s24, 1
    %s26 = scalar_select %p25, 0, %s24
    %s27 = sadd.s32 1, %s16
    %s28 = scalar_select %p25, %s27, %s16
    %p29 = scmp.ge.s32.totalorder %s28, 1
    %s30 = scalar_select %p29, 0, %s28
    %s31 = sadd.s32 1, %s15
    %s32 = scalar_select %p29, %s31, %s15
    %p33 = scmp.ge.s32.totalorder %s32, 2
    %s34 = scalar_select %p33, 0, %s32
    %s35 = ssub.s32 %s15, %s34
    %s36 = ssub.s32 %s17, %s26
    %s37 = sor.u32 %s35, %s36
    %p38 = scmp.eq.s32.totalorder %s37, 0
    %s40 = sadd.s32 %s39, 1
    %s41 = scalar_select %p38, %s39, %s40
    %p44 = pneg %p38
    %p45 = scmp.eq.s32.totalorder %s8, 1
    %p46 = por %p44, %p45
    %p47 = scmp.ne.s32.totalorder %s39, %s42
    %p48 = scmp.eq.s32.totalorder %s8, 0
    %p49 = por %p47, %p48
    %p50 = scmp.ne.s32.totalorder %s39, %s42
    %p51 = scmp.eq.s32.totalorder %s13, 1
    %p52 = por %p50, %p51
    %p53 = scmp.ne.s32.totalorder %s42, %s43
    %p54 = scmp.eq.s32.totalorder %s13, 0
    %p55 = por %p53, %p54
    %p56 = scmp.ne.s32.totalorder %s42, %s43
    %p57 = scmp.eq.s32.totalorder %s14, 1
    %p58 = por %p56, %p57
    %p60 = scmp.ne.s32.totalorder %s43, %s59
    %p61 = scmp.eq.s32.totalorder %s14, 0
    %p62 = por %p60, %p61
    %s63 = ssub.s32 %s16, %s30
    %p64 = scmp.eq.s32.totalorder %s63, 0
    %s66 = sadd.s32 %s65, 1
    %s67 = scalar_select %p64, %s65, %s66
    %p70 = pneg %p64
    %p71 = scmp.eq.s32.totalorder %s8, 1
    %p72 = por %p70, %p71
    %p73 = scmp.ne.s32.totalorder %s65, %s68
    %p74 = scmp.eq.s32.totalorder %s8, 0
    %p75 = por %p73, %p74
    %p76 = scmp.ne.s32.totalorder %s65, %s68
    %p77 = scmp.eq.s32.totalorder %s13, 1
    %p78 = por %p76, %p77
    %p79 = scmp.ne.s32.totalorder %s68, %s69
    %p80 = scmp.eq.s32.totalorder %s13, 0
    %p81 = por %p79, %p80
    %p82 = scmp.ne.s32.totalorder %s68, %s69
    %p83 = scmp.eq.s32.totalorder %s14, 1
    %p84 = por %p82, %p83
    %p86 = scmp.ne.s32.totalorder %s69, %s85
    %p87 = scmp.eq.s32.totalorder %s14, 0
    %p88 = por %p86, %p87
    %s89 = ssub.s32 %s15, %s34
    %s90 = ssub.s32 %s16, %s30
    %s91 = sor.u32 %s89, %s90
    %s92 = ssub.s32 %s17, %s26
    %s93 = sor.u32 %s91, %s92
    %p94 = scmp.eq.s32.totalorder %s93, 0
    %s96 = sadd.s32 %s95, 1
    %s97 = scalar_select %p94, %s95, %s96
    %p100 = pneg %p94
    %p101 = scmp.eq.s32.totalorder %s8, 1
    %p102 = por %p100, %p101
    %p103 = scmp.ne.s32.totalorder %s95, %s98
    %p104 = scmp.eq.s32.totalorder %s8, 0
    %p105 = por %p103, %p104
    %p106 = scmp.ne.s32.totalorder %s95, %s98
    %p107 = scmp.eq.s32.totalorder %s13, 1
    %p108 = por %p106, %p107
    %p109 = scmp.ne.s32.totalorder %s98, %s99
    %p110 = scmp.eq.s32.totalorder %s13, 0
    %p111 = por %p109, %p110
    %p112 = scmp.ne.s32.totalorder %s98, %s99
    %p113 = scmp.eq.s32.totalorder %s14, 1
    %p114 = por %p112, %p113
    %p116 = scmp.ne.s32.totalorder %s99, %s115
    %p117 = scmp.eq.s32.totalorder %s14, 0
    %p118 = por %p116, %p117
    %p119 = scmp.le.s32.totalorder 1, %s8
    %p120 = scmp.lt.s32.totalorder %s8, 3
    %p121 = pnand %p119, %p120
    %p122 = pneg %p121
    // Predicated region
    $region9: #{adaptive_projector_block.1} parent=5 // pred_check
      _
    $region10: #{adaptive_projector_block.1} parent=5 // pred_check_branch
      %124 = sbr.rel (%p121) target = $region12
    $region11: #{adaptive_projector_block.1} parent=5 // pred_region
      %s125 = ssub.s32 %s8, 1
      // Predicated region
      $region13: #{adaptive_projector_block.1} parent=11 // pred_check
        %p126 = pneg %p81
      $region14: #{adaptive_projector_block.1} parent=11 // pred_check_branch
        %128 = sbr.rel (%p126) target = $region16
      $region15: #{adaptive_projector_block.1} parent=11 // pred_region
        %p129 = scmp.lt.s32.totalorder %s19, 0
        %s130 = scalar_select %p129, %s19, 0
        %s131 = smul.addr %s130, 8
        %s132 = scalar_lea.vmem %s1, %s131
      $region16: #{adaptive_projector_block.1} parent=11 // pred_fallthru
        _
    $region12: #{adaptive_projector_block.1} parent=5 // pred_fallthru
      _
    %p133 = scmp.lt.s32.totalorder %s8, 2
    // Predicated region
    $region17: #{adaptive_projector_block.1} parent=5 // pred_check
      %p134 = pneg %p133
    $region18: #{adaptive_projector_block.1} parent=5 // pred_check_branch
      %136 = sbr.rel (%p134) target = $region20
    $region19: #{adaptive_projector_block.1} parent=5 // pred_region
      // Predicated region
      $region21: #{adaptive_projector_block.1} parent=19 // pred_check
        %p137 = pneg %p49
      $region22: #{adaptive_projector_block.1} parent=19 // pred_check_branch
        %139 = sbr.rel (%p137) target = $region24
      $region23: #{adaptive_projector_block.1} parent=19 // pred_region
        %s140 = smul.u32 2, %s17
        %p141 = scmp.lt.s32.totalorder %s15, 1
        %s142 = scalar_select %p141, %s15, 1
        %p143 = scmp.lt.s32.totalorder %s140, 1
        %s144 = scalar_select %p143, %s140, 1
        %s145 = smul.addr %s142, 2
        %s146 = sadd.s32 %s144, %s145
        %s147 = smul.addr %s146, 4
        %s148 = scalar_lea.vmem %s0, %s147
        %s149 = smul.u32 2, %s17
      $region24: #{adaptive_projector_block.1} parent=19 // pred_fallthru
        _
    $region20: #{adaptive_projector_block.1} parent=5 // pred_fallthru
      _
    %p150 = scmp.le.s32.totalorder 1, %s8
    %p151 = scmp.lt.s32.totalorder %s8, 3
    %p152 = pnand %p150, %p151
    %p153 = pneg %p152
    // Predicated region
    $region25: #{adaptive_projector_block.1} parent=5 // pred_check
      _
    $region26: #{adaptive_projector_block.1} parent=5 // pred_check_branch
      %155 = sbr.rel (%p152) target = $region28
    $region27: #{adaptive_projector_block.1} parent=5 // pred_region
      %s156 = ssub.s32 %s8, 1
      %s157 = smul.u32 2, %s20
      %p158 = scmp.lt.s32.totalorder %s18, 1
      %s159 = scalar_select %p158, %s18, 1
      %p160 = scmp.lt.s32.totalorder %s157, 1
      %s161 = scalar_select %p160, %s157, 1
      %s162 = smul.addr %s159, 2
      %s163 = sadd.s32 %s161, %s162
      %s164 = smul.addr %s163, 4
      %s165 = scalar_lea.vmem %s0, %s164
      %p166 = pneg %p55
      %p167 = pneg %p52
      %p168 = scmp.lt.s32.totalorder %s19, 0
      %s169 = scalar_select %p168, %s19, 0
      %s170 = smul.addr %s169, 8
      %s171 = scalar_lea.vmem %s1, %s170
      %p172 = pneg %p81
      %p173 = pneg %p78
      %p174 = pneg %p111
      %p175 = pneg %p108
      %s176 = smul.u32 2, %s20
      %p177 = scmp.lt.s32.totalorder %s18, 1
      %s178 = scalar_select %p177, %s18, 1
      %p179 = scmp.lt.s32.totalorder %s19, 0
      %s180 = scalar_select %p179, %s19, 0
      %p181 = scmp.lt.s32.totalorder %s176, 1
      %s182 = scalar_select %p181, %s176, 1
      %s183 = smul.addr %s180, 2
      %s184 = sadd.s32 %s182, %s183
      %s185 = smul.addr %s178, 2
      %s186 = sadd.s32 %s184, %s185
      %s187 = smul.addr %s186, 8
      %s188 = scalar_lea.vmem %s2, %s187
      %s189 = smul.u32 2, %s20
      %p190 = scmp.lt.s32.totalorder %s18, 1
      %s191 = scalar_select %p190, %s18, 1
      %p192 = scmp.lt.s32.totalorder %s189, 1
      %s193 = scalar_select %p192, %s189, 1
      %s194 = smul.addr %s191, 2
      %s195 = sadd.s32 %s193, %s194
      %s196 = smul.addr %s195, 4
      %s197 = scalar_lea.vmem %s0, %s196
      %s198 = smul.u32 2, %s20
      %p199 = scmp.lt.s32.totalorder %s19, 0
      %s200 = scalar_select %p199, %s19, 0
      %s201 = smul.addr %s200, 8
      %s202 = scalar_lea.vmem %s1, %s201
      %s203 = smul.u32 2, %s20
      %p204 = scmp.lt.s32.totalorder %s18, 1
      %s205 = scalar_select %p204, %s18, 1
      %p206 = scmp.lt.s32.totalorder %s19, 0
      %s207 = scalar_select %p206, %s19, 0
      %p208 = scmp.lt.s32.totalorder %s203, 1
      %s209 = scalar_select %p208, %s203, 1
      %s210 = smul.addr %s207, 2
      %s211 = sadd.s32 %s209, %s210
      %s212 = smul.addr %s205, 2
      %s213 = sadd.s32 %s211, %s212
      %s214 = smul.addr %s213, 8
      %s215 = scalar_lea.vmem %s2, %s214
      %s216 = smul.u32 2, %s20
      %v217 = vld [vmem:[%s202] sm:$0xff]
      %v218 = vld [vmem:[%s197] sm:$0xff]
      %220 = vst [vmem:[#allocation1] ss:$2 sm:$0xff] %v218
      %v221 = vld.sshfl [vmem:[#allocation1] sm:$0xff pattern:$0x75316420]
      %v222 = vld.sshfl [vmem:[#allocation1 + $0x8] sm:$0xff pattern:$0x75316420]
      %vm223 = vcmask 31744
      %v225 = vsel %vm223, %v217, 0
      %vm227 = vcmask 1043456
      %v228 = vsel %vm227, %v221, 0
      %v230 = vsel %vm227, %v222, 0
      %232 = vmatpush.msra.mxu0 0.0
      %233 = vmatpush.msra.mxu0 0.0
      %234 = vmatpush.msra.mxu0 0.0
      %235 = vmatpush.msra.mxu0 0.0
      %236 = vmatpush.msra.mxu0 0.0
      %237 = vmatpush.msra.mxu0 0.0
      %238 = vmatpush.msra.mxu0 0.0
      %239 = vmatpush.msra.mxu0 0.0
      %240 = vmatpush.msra.mxu0 0.0
      %241 = vmatpush.msra.mxu0 0.0
      %242 = vmatpush.msra.mxu0 0.0
      %243 = vmatpush.msra.mxu0 0.0
      %244 = vmatpush.msra.mxu0 0.0
      %245 = vmatpush.msra.mxu0 0.0
      %246 = vmatpush.msra.mxu0 0.0
      %247 = vmatpush.msra.mxu0 %v228
      %248 = vmatmul.f32.gmra.mxu0 %v225
      %v249 = vpop.f32.mrf.mxu0
      %v250 = vadd.f32 0.0, %v249
      %251 = vdwg.mxu0
      %252 = vmatpush.msra.mxu0 0.0
      %253 = vmatpush.msra.mxu0 0.0
      %254 = vmatpush.msra.mxu0 0.0
      %255 = vmatpush.msra.mxu0 0.0
      %256 = vmatpush.msra.mxu0 0.0
      %257 = vmatpush.msra.mxu0 0.0
      %258 = vmatpush.msra.mxu0 0.0
      %259 = vmatpush.msra.mxu0 0.0
      %260 = vmatpush.msra.mxu0 0.0
      %261 = vmatpush.msra.mxu0 0.0
      %262 = vmatpush.msra.mxu0 0.0
      %263 = vmatpush.msra.mxu0 0.0
      %264 = vmatpush.msra.mxu0 0.0
      %265 = vmatpush.msra.mxu0 0.0
      %266 = vmatpush.msra.mxu0 0.0
      %267 = vmatpush.msra.mxu0 %v230
      %268 = vmatmul.f32.gmra.mxu0 %v225
      %v269 = vpop.f32.mrf.mxu0
      %v270 = vadd.f32 0.0, %v269
      %271 = vdwg.mxu0
      %272 = vst [vmem:[%s215] sm:$0xff] %v250
      %273 = vst [vmem:[%s215 + $0x8] sm:$0xff] %v270
      %s274 = smul.u32 2, %s20
      %p275 = scmp.lt.s32.totalorder %s18, 1
      %s276 = scalar_select %p275, %s18, 1
      %p277 = scmp.lt.s32.totalorder %s19, 0
      %s278 = scalar_select %p277, %s19, 0
      %p279 = scmp.lt.s32.totalorder %s274, 1
      %s280 = scalar_select %p279, %s274, 1
      %s281 = smul.addr %s278, 2
      %s282 = sadd.s32 %s280, %s281
      %s283 = smul.addr %s276, 2
      %s284 = sadd.s32 %s282, %s283
      %s285 = smul.addr %s284, 8
      %s286 = scalar_lea.vmem %s2, %s285
      // Predicated region
      $region29: #{adaptive_projector_block.1} parent=27 // pred_check
        %p287 = pneg %p108
      $region30: #{adaptive_projector_block.1} parent=27 // pred_check_branch
        %289 = sbr.rel (%p287) target = $region32
      $region31: #{adaptive_projector_block.1} parent=27 // pred_region
        %s290 = smul.u32 2, %s20
      $region32: #{adaptive_projector_block.1} parent=27 // pred_fallthru
        _
    $region28: #{adaptive_projector_block.1} parent=5 // pred_fallthru
      _
    %p291 = scmp.le.s32.totalorder 2, %s8
    // Predicated region
    $region33: #{adaptive_projector_block.1} parent=5 // pred_check
      %p292 = pneg %p291
    $region34: #{adaptive_projector_block.1} parent=5 // pred_check_branch
      %294 = sbr.rel (%p292) target = $region36
    $region35: #{adaptive_projector_block.1} parent=5 // pred_region
      %s295 = ssub.s32 %s8, 2
      // Predicated region
      $region37: #{adaptive_projector_block.1} parent=35 // pred_check
        %p296 = pneg %p114
      $region38: #{adaptive_projector_block.1} parent=35 // pred_check_branch
        %298 = sbr.rel (%p296) target = $region40
      $region39: #{adaptive_projector_block.1} parent=35 // pred_region
        %s299 = smul.u32 2, %s23
        %p300 = scmp.lt.s32.totalorder %s21, 1
        %s301 = scalar_select %p300, %s21, 1
        %p302 = scmp.lt.s32.totalorder %s22, 0
        %s303 = scalar_select %p302, %s22, 0
        %p304 = scmp.lt.s32.totalorder %s299, 1
        %s305 = scalar_select %p304, %s299, 1
        %s306 = smul.addr %s303, 2
        %s307 = sadd.s32 %s305, %s306
        %s308 = smul.addr %s301, 2
        %s309 = sadd.s32 %s307, %s308
        %s310 = smul.addr %s309, 8
        %s311 = scalar_lea.vmem %s2, %s310
      $region40: #{adaptive_projector_block.1} parent=35 // pred_fallthru
        _
    $region36: #{adaptive_projector_block.1} parent=5 // pred_fallthru
      _
  $region6: #{adaptive_projector_block.1} parent=0 // loop_footer
    %s12 = sadd.s32 1, %s8
  $region7: #{adaptive_projector_block.1} parent=0 // loop_footer_branch
    %7 = sbr.rel target = $region3
  $region8: #{adaptive_projector_block.1} parent=0 // loop_exit
    _

</llo_original>
